<compile_context>
chip_gen: v5e
topology: v5e:2x2
jax: 0.10.0
libtpu: 0.0.40
codegen_flags: <defaults>
</compile_context>

<pallas_src>
import functools

import jax
import jax.numpy as jnp
from jax.experimental import pallas as pl
from jax.experimental.pallas import tpu as pltpu

LN_EPS = 1e-5  # PyTorch nn.LayerNorm default


def _round_up(x, m):
    return -(-x // m) * m


def _masked_layernorm(h, n_real, gamma, beta):
    """LayerNorm over the first `n_real` lanes of h (padded lanes are zero)."""
    n_pad = h.shape[-1]
    inv_n = 1.0 / float(n_real)
    # Padded columns of h are exactly zero, so the plain sum gives the true sum.
    mu = jnp.sum(h, axis=-1, keepdims=True) * inv_n
    lane = jax.lax.broadcasted_iota(jnp.int32, (1, n_pad), 1)
    mask = (lane < n_real).astype(h.dtype)
    centered = (h - mu) * mask                       # zero out padded lanes
    var = jnp.sum(centered * centered, axis=-1, keepdims=True) * inv_n
    # gamma/beta are zero-padded, so padded output lanes stay exactly zero.
    return centered * jax.lax.rsqrt(var + LN_EPS) * gamma + beta


def linear_block_kernel(x_ref, w1_ref, p1_ref, w2_ref, p2_ref, o_ref,
                        *, nio, nhid):
    x = x_ref[...]                                   # (tb, nio_p) f32
    b1, g1, be1 = p1_ref[0:1, :], p1_ref[1:2, :], p1_ref[2:3, :]
    b2, g2, be2 = p2_ref[0:1, :], p2_ref[1:2, :], p2_ref[2:3, :]

    # Linear(nio -> nhid) + LayerNorm(nhid) + ReLU   (bf16 MXU, f32 accumulate)
    h = jnp.dot(x.astype(jnp.bfloat16), w1_ref[...],
                preferred_element_type=jnp.float32) + b1
    h = _masked_layernorm(h, nhid, g1, be1)
    h = jnp.maximum(h, 0.0)

    # Linear(nhid -> nio) + LayerNorm(nio) + ReLU
    y = jnp.dot(h.astype(jnp.bfloat16), w2_ref[...],
                preferred_element_type=jnp.float32) + b2
    y = _masked_layernorm(y, nio, g2, be2)
    y = jnp.maximum(y, 0.0)

    o_ref[...] = y.astype(o_ref.dtype)


def linear_block(x, params, *, tb=None):
    """x: (B, nio) float32. params: dict of f32 weights (see init_params)."""
    B, nio = x.shape
    nhid = params["w1"].shape[1]
    nio_p = _round_up(nio, 128)
    nhid_p = _round_up(nhid, 128)

    if tb is None:
        # Fill the MXU M dim (up to 256 rows) but keep >= 2 grid steps when the
        # batch allows it, so the pipeline (and both v7x cores) have work.
        tb = 256
        while tb > 8 and _round_up(B, tb) < 2 * tb:
            tb //= 2
        tb = max(tb, 8)
    assert tb % 8 == 0, "batch tile must be a multiple of the f32 sublane (8)"
    B_p = _round_up(B, tb)
    grid = (B_p // tb,)

    # ---- wrapper-level padding / packing (in production: pre-pad / pre-cast
    # the weights once instead of per call). ----
    x_p = jnp.pad(x, ((0, B_p - B), (0, nio_p - nio)))
    w1 = jnp.pad(params["w1"], ((0, nio_p - nio), (0, nhid_p - nhid))
                 ).astype(jnp.bfloat16)
    w2 = jnp.pad(params["w2"], ((0, nhid_p - nhid), (0, nio_p - nio))
                 ).astype(jnp.bfloat16)
    p1 = jnp.pad(jnp.concatenate([params["b1"], params["g1"], params["be1"]],
                                 axis=0),
                 ((0, 0), (0, nhid_p - nhid)))       # (3, nhid_p) f32
    p2 = jnp.pad(jnp.concatenate([params["b2"], params["g2"], params["be2"]],
                                 axis=0),
                 ((0, 0), (0, nio_p - nio)))         # (3, nio_p) f32

    # ---- VMEM budget (explicit, halved headroom works on v7x's 64 MiB) ----
    needed = (2 * tb * nio_p * 4            # x tile, double-buffered
              + 2 * tb * nio_p * 4          # out tile, double-buffered
              + 2 * 2 * nio_p * nhid_p * 2  # bf16 weights, double-buffered
              + 2 * (3 * nhid_p + 3 * nio_p) * 4
              + 4 * tb * nhid_p * 4)        # headroom for f32 intermediates
    vmem_limit = int(min(max(2 * needed, 32 * 1024 * 1024), 64 * 1024 * 1024))

    cost = pl.CostEstimate(
        flops=4 * B_p * nio_p * nhid_p,     # two matmuls (2 flops/MAC each)
        transcendentals=2 * B_p,            # two rsqrt per row
        bytes_accessed=(2 * B_p * nio_p * 4                 # x + out
                        + 2 * nio_p * nhid_p * 2            # bf16 weights
                        + (3 * nhid_p + 3 * nio_p) * 4),    # packed LN params
    )

    kernel = functools.partial(linear_block_kernel, nio=nio, nhid=nhid)

    out = pl.pallas_call(
        kernel,
        out_shape=jax.ShapeDtypeStruct((B_p, nio_p), x.dtype),
        grid_spec=pltpu.PrefetchScalarGridSpec(
            num_scalar_prefetch=0,
            grid=grid,
            in_specs=[
                pl.BlockSpec((tb, nio_p), lambda i: (i, 0)),      # x tile
                pl.BlockSpec((nio_p, nhid_p), lambda i: (0, 0)),  # w1 (bf16)
                pl.BlockSpec((3, nhid_p), lambda i: (0, 0)),      # b1/g1/be1
                pl.BlockSpec((nhid_p, nio_p), lambda i: (0, 0)),  # w2 (bf16)
                pl.BlockSpec((3, nio_p), lambda i: (0, 0)),       # b2/g2/be2
            ],
            out_specs=pl.BlockSpec((tb, nio_p), lambda i: (i, 0)),
        ),
        compiler_params=pltpu.CompilerParams(
            dimension_semantics=("parallel",),
            vmem_limit_bytes=vmem_limit),
        cost_estimate=cost,
    )(x_p, w1, p1, w2, p2)

    return out[:B, :nio]


def init_params(key, nio, nhid):
    """Deterministic synthetic init matching the PyTorch module's shapes."""
    k1, k2, k3, k4 = jax.random.split(key, 4)
    lim1 = 1.0 / jnp.sqrt(nio)
    lim2 = 1.0 / jnp.sqrt(nhid)
    return {
        "w1": jax.random.uniform(k1, (nio, nhid), jnp.float32, -lim1, lim1),
        "b1": jax.random.uniform(k2, (1, nhid), jnp.float32, -lim1, lim1),
        "g1": jnp.ones((1, nhid), jnp.float32),    # LayerNorm weight
        "be1": jnp.zeros((1, nhid), jnp.float32),  # LayerNorm bias
        "w2": jax.random.uniform(k3, (nhid, nio), jnp.float32, -lim2, lim2),
        "b2": jax.random.uniform(k4, (1, nio), jnp.float32, -lim2, lim2),
        "g2": jnp.ones((1, nio), jnp.float32),
        "be2": jnp.zeros((1, nio), jnp.float32),
    }


def linear_block_ref(x, p):
    """Pure-JAX reference with matching (bf16-in, f32-acc) matmul precision."""
    def ln(h, g, b):
        mu = jnp.mean(h, axis=-1, keepdims=True)
        var = jnp.mean((h - mu) ** 2, axis=-1, keepdims=True)
        return (h - mu) * jax.lax.rsqrt(var + LN_EPS) * g + b

    h = jnp.dot(x.astype(jnp.bfloat16), p["w1"].astype(jnp.bfloat16),
                preferred_element_type=jnp.float32) + p["b1"]
    h = jnp.maximum(ln(h, p["g1"], p["be1"]), 0.0)
    y = jnp.dot(h.astype(jnp.bfloat16), p["w2"].astype(jnp.bfloat16),
                preferred_element_type=jnp.float32) + p["b2"]
    return jnp.maximum(ln(y, p["g2"], p["be2"]), 0.0)


if __name__ == "__main__":
    B, nio, nhid = 16, 32, 64
    key = jax.random.PRNGKey(0)
    kx, kp = jax.random.split(key)
    x = jax.random.normal(kx, (B, nio), jnp.float32)
    params = init_params(kp, nio, nhid)

    out = jax.block_until_ready(linear_block(x, params))
    ref = linear_block_ref(x, params)

    assert out.shape == (B, nio) and out.dtype == jnp.float32
    # bf16 matmul inputs (matched in the reference): tolerance loosened vs f32.
    assert jnp.allclose(out, ref, atol=1e-3, rtol=1e-3), \
        float(jnp.max(jnp.abs(out - ref)))
    print("KERNEL_OK")
</pallas_src>

<mosaic_0001>
module attributes {stable_mosaic.version = 11 : i64} {
  func.func @linear_block_kernel(%arg0: i32, %arg1: memref<8x128xf32, #tpu.memory_space<vmem>>, %arg2: memref<128x128xbf16, #tpu.memory_space<vmem>>, %arg3: memref<3x128xf32, #tpu.memory_space<vmem>>, %arg4: memref<128x128xbf16, #tpu.memory_space<vmem>>, %arg5: memref<3x128xf32, #tpu.memory_space<vmem>>, %arg6: memref<8x128xf32, #tpu.memory_space<vmem>>) attributes {dimension_semantics = [#tpu.dimension_semantics<parallel>], iteration_bounds = array<i64: 2>, scalar_prefetch = 0 : i64, scratch_operands = 0 : i64, tpu.core_type = #tpu.core_type<tc>, window_params = [{transform_indices = @transform_0, window_bounds = array<i64: 8, 128>}, {pipeline_mode = #tpu.pipeline_mode<synchronous>, transform_indices = @transform_1, window_bounds = array<i64: 128, 128>}, {pipeline_mode = #tpu.pipeline_mode<synchronous>, transform_indices = @transform_2, window_bounds = array<i64: 3, 128>}, {pipeline_mode = #tpu.pipeline_mode<synchronous>, transform_indices = @transform_3, window_bounds = array<i64: 128, 128>}, {pipeline_mode = #tpu.pipeline_mode<synchronous>, transform_indices = @transform_4, window_bounds = array<i64: 3, 128>}, {transform_indices = @transform_5, window_bounds = array<i64: 8, 128>}]} {
    %c0 = arith.constant 0 : index
    %c0_0 = arith.constant 0 : index
    %0 = vector.load %arg1[%c0, %c0_0] : memref<8x128xf32, #tpu.memory_space<vmem>>, vector<8x128xf32>
    %c0_1 = arith.constant 0 : index
    %c0_2 = arith.constant 0 : index
    %1 = vector.load %arg3[%c0_1, %c0_2] : memref<3x128xf32, #tpu.memory_space<vmem>>, vector<1x128xf32>
    %c1 = arith.constant 1 : index
    %c0_3 = arith.constant 0 : index
    %2 = vector.load %arg3[%c1, %c0_3] : memref<3x128xf32, #tpu.memory_space<vmem>>, vector<1x128xf32>
    %c2 = arith.constant 2 : index
    %c0_4 = arith.constant 0 : index
    %3 = vector.load %arg3[%c2, %c0_4] : memref<3x128xf32, #tpu.memory_space<vmem>>, vector<1x128xf32>
    %c0_5 = arith.constant 0 : index
    %c0_6 = arith.constant 0 : index
    %4 = vector.load %arg5[%c0_5, %c0_6] : memref<3x128xf32, #tpu.memory_space<vmem>>, vector<1x128xf32>
    %c1_7 = arith.constant 1 : index
    %c0_8 = arith.constant 0 : index
    %5 = vector.load %arg5[%c1_7, %c0_8] : memref<3x128xf32, #tpu.memory_space<vmem>>, vector<1x128xf32>
    %c2_9 = arith.constant 2 : index
    %c0_10 = arith.constant 0 : index
    %6 = vector.load %arg5[%c2_9, %c0_10] : memref<3x128xf32, #tpu.memory_space<vmem>>, vector<1x128xf32>
    %7 = arith.truncf %0 : vector<8x128xf32> to vector<8x128xbf16>
    %c0_11 = arith.constant 0 : index
    %c0_12 = arith.constant 0 : index
    %8 = vector.load %arg2[%c0_11, %c0_12] : memref<128x128xbf16, #tpu.memory_space<vmem>>, vector<128x128xbf16>
    %cst = arith.constant dense<0.000000e+00> : vector<8x128xf32>
    %9 = tpu.matmul %7, %8, %cst {dimension_numbers = #tpu.dot_dimension_numbers<[1], [0], [0], [1], [0, 0, 1, 1], [], []>} : vector<8x128xbf16>, vector<128x128xbf16>, vector<8x128xf32> -> vector<8x128xf32>
    %10 = vector.broadcast %1 : vector<1x128xf32> to vector<8x128xf32>
    %11 = arith.addf %9, %10 : vector<8x128xf32>
    %cst_13 = arith.constant dense<0.000000e+00> : vector<8xf32>
    %12 = vector.multi_reduction <add>, %11, %cst_13 [1] : vector<8x128xf32> to vector<8xf32>
    %13 = vector.shape_cast %12 : vector<8xf32> to vector<8x1xf32>
    %cst_14 = arith.constant 1.562500e-02 : f32
    %14 = vector.broadcast %cst_14 : f32 to vector<8x1xf32>
    %15 = arith.mulf %13, %14 : vector<8x1xf32>
    %16 = tpu.iota {dimensions = array<i32: 1>} : vector<1x128xi32>
    %c64_i32 = arith.constant 64 : i32
    %17 = vector.broadcast %c64_i32 : i32 to vector<1x128xi32>
    %18 = arith.cmpi slt, %16, %17 : vector<1x128xi32>
    %19 = arith.extui %18 : vector<1x128xi1> to vector<1x128xi32>
    %20 = arith.sitofp %19 : vector<1x128xi32> to vector<1x128xf32>
    %21 = vector.broadcast %15 : vector<8x1xf32> to vector<8x128xf32>
    %22 = arith.subf %11, %21 : vector<8x128xf32>
    %23 = vector.broadcast %20 : vector<1x128xf32> to vector<8x128xf32>
    %24 = arith.mulf %22, %23 : vector<8x128xf32>
    %25 = arith.mulf %24, %24 : vector<8x128xf32>
    %cst_15 = arith.constant dense<0.000000e+00> : vector<8xf32>
    %26 = vector.multi_reduction <add>, %25, %cst_15 [1] : vector<8x128xf32> to vector<8xf32>
    %27 = vector.shape_cast %26 : vector<8xf32> to vector<8x1xf32>
    %cst_16 = arith.constant 1.562500e-02 : f32
    %28 = vector.broadcast %cst_16 : f32 to vector<8x1xf32>
    %29 = arith.mulf %27, %28 : vector<8x1xf32>
    %cst_17 = arith.constant 9.99999974E-6 : f32
    %30 = vector.broadcast %cst_17 : f32 to vector<8x1xf32>
    %31 = arith.addf %29, %30 : vector<8x1xf32>
    %32 = math.rsqrt %31 : vector<8x1xf32>
    %33 = vector.broadcast %32 : vector<8x1xf32> to vector<8x128xf32>
    %34 = arith.mulf %24, %33 : vector<8x128xf32>
    %35 = vector.broadcast %2 : vector<1x128xf32> to vector<8x128xf32>
    %36 = arith.mulf %34, %35 : vector<8x128xf32>
    %37 = vector.broadcast %3 : vector<1x128xf32> to vector<8x128xf32>
    %38 = arith.addf %36, %37 : vector<8x128xf32>
    %cst_18 = arith.constant 0.000000e+00 : f32
    %39 = vector.broadcast %cst_18 : f32 to vector<8x128xf32>
    %40 = arith.maximumf %38, %39 : vector<8x128xf32>
    %41 = arith.truncf %40 : vector<8x128xf32> to vector<8x128xbf16>
    %c0_19 = arith.constant 0 : index
    %c0_20 = arith.constant 0 : index
    %42 = vector.load %arg4[%c0_19, %c0_20] : memref<128x128xbf16, #tpu.memory_space<vmem>>, vector<128x128xbf16>
    %cst_21 = arith.constant dense<0.000000e+00> : vector<8x128xf32>
    %43 = tpu.matmul %41, %42, %cst_21 {dimension_numbers = #tpu.dot_dimension_numbers<[1], [0], [0], [1], [0, 0, 1, 1], [], []>} : vector<8x128xbf16>, vector<128x128xbf16>, vector<8x128xf32> -> vector<8x128xf32>
    %44 = vector.broadcast %4 : vector<1x128xf32> to vector<8x128xf32>
    %45 = arith.addf %43, %44 : vector<8x128xf32>
    %cst_22 = arith.constant dense<0.000000e+00> : vector<8xf32>
    %46 = vector.multi_reduction <add>, %45, %cst_22 [1] : vector<8x128xf32> to vector<8xf32>
    %47 = vector.shape_cast %46 : vector<8xf32> to vector<8x1xf32>
    %cst_23 = arith.constant 3.125000e-02 : f32
    %48 = vector.broadcast %cst_23 : f32 to vector<8x1xf32>
    %49 = arith.mulf %47, %48 : vector<8x1xf32>
    %50 = tpu.iota {dimensions = array<i32: 1>} : vector<1x128xi32>
    %c32_i32 = arith.constant 32 : i32
    %51 = vector.broadcast %c32_i32 : i32 to vector<1x128xi32>
    %52 = arith.cmpi slt, %50, %51 : vector<1x128xi32>
    %53 = arith.extui %52 : vector<1x128xi1> to vector<1x128xi32>
    %54 = arith.sitofp %53 : vector<1x128xi32> to vector<1x128xf32>
    %55 = vector.broadcast %49 : vector<8x1xf32> to vector<8x128xf32>
    %56 = arith.subf %45, %55 : vector<8x128xf32>
    %57 = vector.broadcast %54 : vector<1x128xf32> to vector<8x128xf32>
    %58 = arith.mulf %56, %57 : vector<8x128xf32>
    %59 = arith.mulf %58, %58 : vector<8x128xf32>
    %cst_24 = arith.constant dense<0.000000e+00> : vector<8xf32>
    %60 = vector.multi_reduction <add>, %59, %cst_24 [1] : vector<8x128xf32> to vector<8xf32>
    %61 = vector.shape_cast %60 : vector<8xf32> to vector<8x1xf32>
    %cst_25 = arith.constant 3.125000e-02 : f32
    %62 = vector.broadcast %cst_25 : f32 to vector<8x1xf32>
    %63 = arith.mulf %61, %62 : vector<8x1xf32>
    %cst_26 = arith.constant 9.99999974E-6 : f32
    %64 = vector.broadcast %cst_26 : f32 to vector<8x1xf32>
    %65 = arith.addf %63, %64 : vector<8x1xf32>
    %66 = math.rsqrt %65 : vector<8x1xf32>
    %67 = vector.broadcast %66 : vector<8x1xf32> to vector<8x128xf32>
    %68 = arith.mulf %58, %67 : vector<8x128xf32>
    %69 = vector.broadcast %5 : vector<1x128xf32> to vector<8x128xf32>
    %70 = arith.mulf %68, %69 : vector<8x128xf32>
    %71 = vector.broadcast %6 : vector<1x128xf32> to vector<8x128xf32>
    %72 = arith.addf %70, %71 : vector<8x128xf32>
    %cst_27 = arith.constant 0.000000e+00 : f32
    %73 = vector.broadcast %cst_27 : f32 to vector<8x128xf32>
    %74 = arith.maximumf %72, %73 : vector<8x128xf32>
    %c0_28 = arith.constant 0 : index
    %c0_29 = arith.constant 0 : index
    %75 = vector.load %arg6[%c0_28, %c0_29] : memref<8x128xf32, #tpu.memory_space<vmem>>, vector<8x128xf32>
    tpu.vector_store %arg6[%c0_28, %c0_29], %74 {strides = array<i32>} : memref<8x128xf32, #tpu.memory_space<vmem>>, vector<8x128xf32>,
    return
  }
  func.func @transform_0(%arg0: i32) -> (i32, i32) {
    %c0_i32 = arith.constant 0 : i32
    %c0_i32_0 = arith.constant 0 : i32
    return %arg0, %c0_i32 : i32, i32
  }
  func.func @transform_1(%arg0: i32) -> (i32, i32) {
    %c0_i32 = arith.constant 0 : i32
    %c0_i32_0 = arith.constant 0 : i32
    %c0_i32_1 = arith.constant 0 : i32
    return %c0_i32, %c0_i32_0 : i32, i32
  }
  func.func @transform_2(%arg0: i32) -> (i32, i32) {
    %c0_i32 = arith.constant 0 : i32
    %c0_i32_0 = arith.constant 0 : i32
    %c0_i32_1 = arith.constant 0 : i32
    return %c0_i32, %c0_i32_0 : i32, i32
  }
  func.func @transform_3(%arg0: i32) -> (i32, i32) {
    %c0_i32 = arith.constant 0 : i32
    %c0_i32_0 = arith.constant 0 : i32
    %c0_i32_1 = arith.constant 0 : i32
    return %c0_i32, %c0_i32_0 : i32, i32
  }
  func.func @transform_4(%arg0: i32) -> (i32, i32) {
    %c0_i32 = arith.constant 0 : i32
    %c0_i32_0 = arith.constant 0 : i32
    %c0_i32_1 = arith.constant 0 : i32
    return %c0_i32, %c0_i32_0 : i32, i32
  }
  func.func @transform_5(%arg0: i32) -> (i32, i32) {
    %c0_i32 = arith.constant 0 : i32
    %c0_i32_0 = arith.constant 0 : i32
    return %arg0, %c0_i32 : i32, i32
  }
}

</mosaic_0001>

<llo_original>
// kernel: tpu_custom_call.1
$region0: #{tpu_custom_call.1}
  #allocation0 [shape = 'u32[]', space=smem, size = 0x4, offset = 0x4, fixed_abs, tag = 'smem constant byte address 0x4 - core index']
  #allocation1 [shape = 'u32[72,128]{1,0:T(1,128)}', space=vmem, size = 0x9000, scoped, tag = 'internal scratch']
  %s0 = inlined_call_operand.hbm [shape: f32[16,128], index: 0, kind: input, shape index: {}]
  %s1 = inlined_call_operand.hbm [shape: bf16[128,128], index: 1, kind: input, shape index: {}]
  %s2 = inlined_call_operand.hbm [shape: f32[3,128], index: 2, kind: input, shape index: {}]
  %s3 = inlined_call_operand.hbm [shape: bf16[128,128], index: 3, kind: input, shape index: {}]
  %s4 = inlined_call_operand.hbm [shape: f32[3,128], index: 4, kind: input, shape index: {}]
  %s5 = inlined_call_operand.hbm [shape: f32[16,128], index: 5, kind: output, shape index: {}]
  %s6 = sld [smem:[#allocation0]]
  $region73: #{tpu_custom_call.1} parent=0
    _
  %s8 = ssub.s32 1, %s6
  %s9 = scalar_select 0, %s8, %s6
  $region1: #{tpu_custom_call.1} parent=0
    #allocation2 [shape = 'u8[8192]{0}', space=vmem, size = 0x2000, scoped, tag = 'input window, operand 0']
    #allocation3 [shape = 's32[2]{0}', space=sflag, size = 0x8, scoped, tag = 'scoped memory for tpu_custom_call.1']
    #allocation4 [shape = 's32[2]{0}', space=sflag, size = 0x8, scoped, tag = 'scoped memory for tpu_custom_call.1']
    #allocation5 [shape = 'u8[32768]{0}', space=vmem, size = 0x8000, scoped, tag = 'input window, operand 1, single buffered']
    #allocation6 [shape = 's32[1]{0}', space=sflag, size = 0x4, scoped, tag = 'scoped memory for tpu_custom_call.1']
    #allocation7 [shape = 'u8[2048]{0}', space=vmem, size = 0x800, scoped, tag = 'input window, operand 2, single buffered']
    #allocation8 [shape = 'u8[32768]{0}', space=vmem, size = 0x8000, scoped, tag = 'input window, operand 3, single buffered']
    #allocation9 [shape = 's32[1]{0}', space=sflag, size = 0x4, scoped, tag = 'scoped memory for tpu_custom_call.1']
    #allocation10 [shape = 'u8[2048]{0}', space=vmem, size = 0x800, scoped, tag = 'input window, operand 4, single buffered']
    #allocation11 [shape = 'u8[8192]{0}', space=vmem, size = 0x2000, scoped, tag = 'output window, operand 0']
    %10 = vsyncpa [#allocation3], 0
    %s11 = scalar_lea.sflag [#allocation3], 1
    %12 = vsyncpa %s11, 0
    %13 = vsyncpa [#allocation6], 0
    %14 = vsyncpa [#allocation9], 0
    %15 = vsyncpa [#allocation4], 0
    %s16 = scalar_lea.sflag [#allocation4], 1
    %17 = vsyncpa %s16, 0
    loop: start=0, step=1, limit=4
    $region2: #{tpu_custom_call.1} parent=1 // loop_pre_header
      _
    $region3: #{tpu_custom_call.1} parent=1 // loop_header
      %s19 = sphi 0, %s23
      %p20 = scmp.ge.s32.totalorder %s19, 4
      %s29 = sphi 0, %s31
      %s32 = sphi 0, %s29
      %s33 = sphi 0, %s32
      %s49 = sphi 0, %s33
      %s53 = sphi 0, %s53
      %s55 = sphi 0, %s53
      %s56 = sphi 0, %s55
      %s70 = sphi 0, %s56
      %s74 = sphi 0, %s74
      %s76 = sphi 0, %s74
      %s77 = sphi 0, %s76
      %s91 = sphi 0, %s77
      %s95 = sphi 0, %s95
      %s97 = sphi 0, %s95
      %s98 = sphi 0, %s97
      %s112 = sphi 0, %s98
      %s116 = sphi 0, %s116
      %s118 = sphi 0, %s116
      %s119 = sphi 0, %s118
      %s133 = sphi 0, %s119
      %s139 = sphi 0, %s141
      %s142 = sphi 0, %s139
      %s143 = sphi 0, %s142
      %s159 = sphi 0, %s143
    $region4: #{tpu_custom_call.1} parent=1 // loop_header_branch
      %22 = sbr.rel (%p20) target = $region8
    $region5: #{tpu_custom_call.1} parent=1 // loop_body
      %s24 = ssub.s32 %s19, 1
      %s25 = ssub.s32 %s19, 2
      %s26 = sadd.s32 %s19, 1
      %s27 = ssub.s32 %s19, %s26
      %p28 = scmp.eq.s32.totalorder %s27, 0
      %s30 = sadd.s32 %s29, 1
      %s31 = scalar_select %p28, %s29, %s30
      %p34 = pneg %p28
      %p35 = scmp.eq.s32.totalorder %s19, 1
      %p36 = por %p34, %p35
      %p37 = scmp.ne.s32.totalorder %s29, %s32
      %p38 = scmp.eq.s32.totalorder %s19, 0
      %p39 = por %p37, %p38
      %p40 = scmp.ne.s32.totalorder %s29, %s32
      %p41 = scmp.eq.s32.totalorder %s24, 1
      %p42 = por %p40, %p41
      %p43 = scmp.ne.s32.totalorder %s32, %s33
      %p44 = scmp.eq.s32.totalorder %s24, 0
      %p45 = por %p43, %p44
      %p46 = scmp.ne.s32.totalorder %s32, %s33
      %p47 = scmp.eq.s32.totalorder %s25, 1
      %p48 = por %p46, %p47
      %p50 = scmp.ne.s32.totalorder %s33, %s49
      %p51 = scmp.eq.s32.totalorder %s25, 0
      %p52 = por %p50, %p51
      %s54 = sadd.s32 %s53, 1
      %p57 = scmp.eq.s32.totalorder %s19, 1
      %p58 = scmp.ne.s32.totalorder %s53, %s55
      %p59 = scmp.eq.s32.totalorder %s19, 0
      %p60 = por %p58, %p59
      %p61 = scmp.ne.s32.totalorder %s53, %s55
      %p62 = scmp.eq.s32.totalorder %s24, 1
      %p63 = por %p61, %p62
      %p64 = scmp.ne.s32.totalorder %s55, %s56
      %p65 = scmp.eq.s32.totalorder %s24, 0
      %p66 = por %p64, %p65
      %p67 = scmp.ne.s32.totalorder %s55, %s56
      %p68 = scmp.eq.s32.totalorder %s25, 1
      %p69 = por %p67, %p68
      %p71 = scmp.ne.s32.totalorder %s56, %s70
      %p72 = scmp.eq.s32.totalorder %s25, 0
      %p73 = por %p71, %p72
      %s75 = sadd.s32 %s74, 1
      %p78 = scmp.eq.s32.totalorder %s19, 1
      %p79 = scmp.ne.s32.totalorder %s74, %s76
      %p80 = scmp.eq.s32.totalorder %s19, 0
      %p81 = por %p79, %p80
      %p82 = scmp.ne.s32.totalorder %s74, %s76
      %p83 = scmp.eq.s32.totalorder %s24, 1
      %p84 = por %p82, %p83
      %p85 = scmp.ne.s32.totalorder %s76, %s77
      %p86 = scmp.eq.s32.totalorder %s24, 0
      %p87 = por %p85, %p86
      %p88 = scmp.ne.s32.totalorder %s76, %s77
      %p89 = scmp.eq.s32.totalorder %s25, 1
      %p90 = por %p88, %p89
      %p92 = scmp.ne.s32.totalorder %s77, %s91
      %p93 = scmp.eq.s32.totalorder %s25, 0
      %p94 = por %p92, %p93
      %s96 = sadd.s32 %s95, 1
      %p99 = scmp.eq.s32.totalorder %s19, 1
      %p100 = scmp.ne.s32.totalorder %s95, %s97
      %p101 = scmp.eq.s32.totalorder %s19, 0
      %p102 = por %p100, %p101
      %p103 = scmp.ne.s32.totalorder %s95, %s97
      %p104 = scmp.eq.s32.totalorder %s24, 1
      %p105 = por %p103, %p104
      %p106 = scmp.ne.s32.totalorder %s97, %s98
      %p107 = scmp.eq.s32.totalorder %s24, 0
      %p108 = por %p106, %p107
      %p109 = scmp.ne.s32.totalorder %s97, %s98
      %p110 = scmp.eq.s32.totalorder %s25, 1
      %p111 = por %p109, %p110
      %p113 = scmp.ne.s32.totalorder %s98, %s112
      %p114 = scmp.eq.s32.totalorder %s25, 0
      %p115 = por %p113, %p114
      %s117 = sadd.s32 %s116, 1
      %p120 = scmp.eq.s32.totalorder %s19, 1
      %p121 = scmp.ne.s32.totalorder %s116, %s118
      %p122 = scmp.eq.s32.totalorder %s19, 0
      %p123 = por %p121, %p122
      %p124 = scmp.ne.s32.totalorder %s116, %s118
      %p125 = scmp.eq.s32.totalorder %s24, 1
      %p126 = por %p124, %p125
      %p127 = scmp.ne.s32.totalorder %s118, %s119
      %p128 = scmp.eq.s32.totalorder %s24, 0
      %p129 = por %p127, %p128
      %p130 = scmp.ne.s32.totalorder %s118, %s119
      %p131 = scmp.eq.s32.totalorder %s25, 1
      %p132 = por %p130, %p131
      %p134 = scmp.ne.s32.totalorder %s119, %s133
      %p135 = scmp.eq.s32.totalorder %s25, 0
      %p136 = por %p134, %p135
      %s137 = ssub.s32 %s19, %s26
      %p138 = scmp.eq.s32.totalorder %s137, 0
      %s140 = sadd.s32 %s139, 1
      %s141 = scalar_select %p138, %s139, %s140
      %p144 = pneg %p138
      %p145 = scmp.eq.s32.totalorder %s19, 1
      %p146 = por %p144, %p145
      %p147 = scmp.ne.s32.totalorder %s139, %s142
      %p148 = scmp.eq.s32.totalorder %s19, 0
      %p149 = por %p147, %p148
      %p150 = scmp.ne.s32.totalorder %s139, %s142
      %p151 = scmp.eq.s32.totalorder %s24, 1
      %p152 = por %p150, %p151
      %p153 = scmp.ne.s32.totalorder %s142, %s143
      %p154 = scmp.eq.s32.totalorder %s24, 0
      %p155 = por %p153, %p154
      %p156 = scmp.ne.s32.totalorder %s142, %s143
      %p157 = scmp.eq.s32.totalorder %s25, 1
      %p158 = por %p156, %p157
      %p160 = scmp.ne.s32.totalorder %s143, %s159
      %p161 = scmp.eq.s32.totalorder %s25, 0
      %p162 = por %p160, %p161
      %p163 = scmp.le.s32.totalorder 1, %s19
      %p164 = scmp.lt.s32.totalorder %s19, 3
      %p165 = pnand %p163, %p164
      %p166 = pneg %p165
      // Predicated region
      $region9: #{tpu_custom_call.1} parent=5 // pred_check
        _
      $region10: #{tpu_custom_call.1} parent=5 // pred_check_branch
        %168 = sbr.rel (%p165) target = $region12
      $region11: #{tpu_custom_call.1} parent=5 // pred_region
        %s169 = ssub.s32 %s19, 1
        // Predicated region
        $region13: #{tpu_custom_call.1} parent=11 // pred_check
          %p170 = pneg %p66
        $region14: #{tpu_custom_call.1} parent=11 // pred_check_branch
          %172 = sbr.rel (%p170) target = $region16
        $region15: #{tpu_custom_call.1} parent=11 // pred_region
          %174 = vsyncadd [#allocation6], 0
          %s175 = sshll.u32 %s1, 4
          %s176 = int_to_ptr.hbm [resolvable:$true] %s175
          %s177 = sshll.u32 [#allocation5], 4
          %s178 = int_to_ptr.vmem [resolvable:$true] %s177
          %183 = dma.hbm_to_vmem [thread:$0]  %s176, 1024, %s178, [#allocation6], 64, 64, 4
        $region16: #{tpu_custom_call.1} parent=11 // pred_fallthru
          _
        // Predicated region
        $region17: #{tpu_custom_call.1} parent=11 // pred_check
          %p184 = pneg %p87
        $region18: #{tpu_custom_call.1} parent=11 // pred_check_branch
          %186 = sbr.rel (%p184) target = $region20
        $region19: #{tpu_custom_call.1} parent=11 // pred_region
          %188 = vsyncadd [#allocation6], 0
          %s190 = sshll.u32 %s2, 4
          %s191 = int_to_ptr.hbm [resolvable:$true] %s190
          %s192 = sshll.u32 [#allocation7], 4
          %s193 = int_to_ptr.vmem [resolvable:$true] %s192
          %195 = dma.hbm_to_vmem [thread:$0]  %s191, 64, %s193, [#allocation6]
        $region20: #{tpu_custom_call.1} parent=11 // pred_fallthru
          _
        // Predicated region
        $region21: #{tpu_custom_call.1} parent=11 // pred_check
          %p196 = pneg %p108
        $region22: #{tpu_custom_call.1} parent=11 // pred_check_branch
          %198 = sbr.rel (%p196) target = $region24
        $region23: #{tpu_custom_call.1} parent=11 // pred_region
          %200 = vsyncadd [#allocation9], 0
          %s201 = sshll.u32 %s3, 4
          %s202 = int_to_ptr.hbm [resolvable:$true] %s201
          %s203 = sshll.u32 [#allocation8], 4
          %s204 = int_to_ptr.vmem [resolvable:$true] %s203
          %209 = dma.hbm_to_vmem [thread:$0]  %s202, 1024, %s204, [#allocation9], 64, 64, 4
        $region24: #{tpu_custom_call.1} parent=11 // pred_fallthru
          _
        // Predicated region
        $region25: #{tpu_custom_call.1} parent=11 // pred_check
          %p210 = pneg %p129
        $region26: #{tpu_custom_call.1} parent=11 // pred_check_branch
          %212 = sbr.rel (%p210) target = $region28
        $region27: #{tpu_custom_call.1} parent=11 // pred_region
          %214 = vsyncadd [#allocation9], 0
          %s216 = sshll.u32 %s4, 4
          %s217 = int_to_ptr.hbm [resolvable:$true] %s216
          %s218 = sshll.u32 [#allocation10], 4
          %s219 = int_to_ptr.vmem [resolvable:$true] %s218
          %221 = dma.hbm_to_vmem [thread:$0]  %s217, 64, %s219, [#allocation9]
        $region28: #{tpu_custom_call.1} parent=11 // pred_fallthru
          _
      $region12: #{tpu_custom_call.1} parent=5 // pred_fallthru
        _
      %p222 = scmp.lt.s32.totalorder %s19, 2
      // Predicated region
      $region29: #{tpu_custom_call.1} parent=5 // pred_check
        %p223 = pneg %p222
      $region30: #{tpu_custom_call.1} parent=5 // pred_check_branch
        %225 = sbr.rel (%p223) target = $region32
      $region31: #{tpu_custom_call.1} parent=5 // pred_region
        // Predicated region
        $region33: #{tpu_custom_call.1} parent=31 // pred_check
          %p226 = pneg %p39
        $region34: #{tpu_custom_call.1} parent=31 // pred_check_branch
          %228 = sbr.rel (%p226) target = $region36
        $region35: #{tpu_custom_call.1} parent=31 // pred_region
          %s229 = sand.u32 %s29, 1
          %s230 = scalar_lea.sflag [#allocation3], %s229
          %s231 = sand.u32 %s29, 1
          %s232 = smul.addr %s231, 8
          %s233 = scalar_lea.vmem [#allocation2], %s232
          %235 = vsyncadd %s230, 0
          %s236 = smul.addr %s19, 8
          %s237 = scalar_lea.hbm %s0, %s236
          %s239 = sshll.u32 %s237, 4
          %s240 = int_to_ptr.hbm [resolvable:$true] %s239
          %s241 = sshll.u32 %s233, 4
          %s242 = int_to_ptr.vmem [resolvable:$true] %s241
          %244 = dma.hbm_to_vmem [thread:$0]  %s240, 128, %s242, %s230
        $region36: #{tpu_custom_call.1} parent=31 // pred_fallthru
          _
      $region32: #{tpu_custom_call.1} parent=5 // pred_fallthru
        _
      %p245 = scmp.le.s32.totalorder 1, %s19
      %p246 = scmp.lt.s32.totalorder %s19, 3
      %p247 = pnand %p245, %p246
      %p248 = pneg %p247
      // Predicated region
      $region37: #{tpu_custom_call.1} parent=5 // pred_check
        _
      $region38: #{tpu_custom_call.1} parent=5 // pred_check_branch
        %250 = sbr.rel (%p247) target = $region40
      $region39: #{tpu_custom_call.1} parent=5 // pred_region
        %s251 = ssub.s32 %s19, 1
        %s252 = sand.u32 %s32, 1
        %s253 = scalar_lea.sflag [#allocation3], %s252
        %s254 = sand.u32 %s32, 1
        %s255 = smul.addr %s254, 8
        %s256 = scalar_lea.vmem [#allocation2], %s255
        // Predicated region
        $region41: #{tpu_custom_call.1} parent=39 // pred_check
          %p257 = pneg %p45
        $region42: #{tpu_custom_call.1} parent=39 // pred_check_branch
          %259 = sbr.rel (%p257) target = $region44
        $region43: #{tpu_custom_call.1} parent=39 // pred_region
          %261 = dma.done %s253, 128
        $region44: #{tpu_custom_call.1} parent=39 // pred_fallthru
          _
        // Predicated region
        $region45: #{tpu_custom_call.1} parent=39 // pred_check
          %p262 = pneg %p66
        $region46: #{tpu_custom_call.1} parent=39 // pred_check_branch
          %264 = sbr.rel (%p262) target = $region48
        $region47: #{tpu_custom_call.1} parent=39 // pred_region
          %266 = dma.done [#allocation6], 1024
        $region48: #{tpu_custom_call.1} parent=39 // pred_fallthru
          _
        // Predicated region
        $region49: #{tpu_custom_call.1} parent=39 // pred_check
          %p267 = pneg %p87
        $region50: #{tpu_custom_call.1} parent=39 // pred_check_branch
          %269 = sbr.rel (%p267) target = $region52
        $region51: #{tpu_custom_call.1} parent=39 // pred_region
          %271 = dma.done [#allocation6], 64
        $region52: #{tpu_custom_call.1} parent=39 // pred_fallthru
          _
        // Predicated region
        $region53: #{tpu_custom_call.1} parent=39 // pred_check
          %p272 = pneg %p108
        $region54: #{tpu_custom_call.1} parent=39 // pred_check_branch
          %274 = sbr.rel (%p272) target = $region56
        $region55: #{tpu_custom_call.1} parent=39 // pred_region
          %276 = dma.done [#allocation9], 1024
        $region56: #{tpu_custom_call.1} parent=39 // pred_fallthru
          _
        // Predicated region
        $region57: #{tpu_custom_call.1} parent=39 // pred_check
          %p277 = pneg %p129
        $region58: #{tpu_custom_call.1} parent=39 // pred_check_branch
          %279 = sbr.rel (%p277) target = $region60
        $region59: #{tpu_custom_call.1} parent=39 // pred_region
          %281 = dma.done [#allocation9], 64
        $region60: #{tpu_custom_call.1} parent=39 // pred_fallthru
          _
        %s282 = sand.u32 %s32, 1
        %s283 = scalar_lea.sflag [#allocation3], %s282
        %s284 = sand.u32 %s32, 1
        %s285 = smul.addr %s284, 8
        %s286 = scalar_lea.vmem [#allocation2], %s285
        %p287 = pneg %p45
        %p288 = pneg %p42
        %p289 = pneg %p66
        %p290 = pneg %p63
        %p291 = pneg %p87
        %p292 = pneg %p84
        %p293 = pneg %p108
        %p294 = pneg %p105
        %p295 = pneg %p129
        %p296 = pneg %p126
        %p297 = pneg %p155
        %p298 = pneg %p152
        %s299 = sand.u32 %s142, 1
        %s300 = scalar_lea.sflag [#allocation4], %s299
        %s301 = sand.u32 %s142, 1
        %s302 = smul.addr %s301, 8
        %s303 = scalar_lea.vmem [#allocation11], %s302
        %v304 = vld [vmem:[%s256] sm:$0xff]
        %v305 = vld [vmem:[#allocation7] sm:$0x1]
        %v306 = vld [vmem:[#allocation7 + $0x1] sm:$0x1]
        %v307 = vld [vmem:[#allocation7 + $0x2] sm:$0x1]
        %v308 = vld [vmem:[#allocation10] sm:$0x1]
        %v309 = vld [vmem:[#allocation10 + $0x1] sm:$0x1]
        %v310 = vld [vmem:[#allocation10 + $0x2] sm:$0x1]
        %v311 = vpack.c.bf16 %v304, %v304
        %v312 = vld [vmem:[#allocation5] sm:$0xf]
        %v313 = vld [vmem:[#allocation5 + $0x4] sm:$0xf]
        %v314 = vld [vmem:[#allocation5 + $0x8] sm:$0xf]
        %v315 = vld [vmem:[#allocation5 + $0xc] sm:$0xf]
        %v316 = vld [vmem:[#allocation5 + $0x10] sm:$0xf]
        %v317 = vld [vmem:[#allocation5 + $0x14] sm:$0xf]
        %v318 = vld [vmem:[#allocation5 + $0x18] sm:$0xf]
        %v319 = vld [vmem:[#allocation5 + $0x1c] sm:$0xf]
        %v320 = vld [vmem:[#allocation5 + $0x20] sm:$0xf]
        %v321 = vld [vmem:[#allocation5 + $0x24] sm:$0xf]
        %v322 = vld [vmem:[#allocation5 + $0x28] sm:$0xf]
        %v323 = vld [vmem:[#allocation5 + $0x2c] sm:$0xf]
        %v324 = vld [vmem:[#allocation5 + $0x30] sm:$0xf]
        %v325 = vld [vmem:[#allocation5 + $0x34] sm:$0xf]
        %v326 = vld [vmem:[#allocation5 + $0x38] sm:$0xf]
        %v327 = vld [vmem:[#allocation5 + $0x3c] sm:$0xf]
        %v328 = vperm.slane %v305, 0
        %v345 = vunpack.c.l.b16 %v312
        %v346 = vunpack.c.l.b16 %v313
        %v347 = vunpack.c.l.b16 %v314
        %v348 = vunpack.c.l.b16 %v315
        %v349 = vunpack.c.l.b16 %v316
        %v350 = vunpack.c.l.b16 %v317
        %v351 = vunpack.c.l.b16 %v318
        %v352 = vunpack.c.l.b16 %v319
        %v353 = vunpack.c.l.b16 %v320
        %v354 = vunpack.c.l.b16 %v321
        %v355 = vunpack.c.l.b16 %v322
        %v356 = vunpack.c.l.b16 %v323
        %v357 = vunpack.c.l.b16 %v324
        %v358 = vunpack.c.l.b16 %v325
        %v359 = vunpack.c.l.b16 %v326
        %v360 = vunpack.c.l.b16 %v327
        %v361 = vpack.c.b16 %v346, %v345
        %v362 = vpack.c.b16 %v348, %v347
        %v363 = vpack.c.b16 %v350, %v349
        %v364 = vpack.c.b16 %v352, %v351
        %v365 = vpack.c.b16 %v354, %v353
        %v366 = vpack.c.b16 %v356, %v355
        %v367 = vpack.c.b16 %v358, %v357
        %v368 = vpack.c.b16 %v360, %v359
        %377 = vmatpush.bf16.msra.mxu0 %v368
        %378 = vmatpush.bf16.msra.mxu0 %v367
        %379 = vmatpush.bf16.msra.mxu0 %v366
        %380 = vmatpush.bf16.msra.mxu0 %v365
        %381 = vmatpush.bf16.msra.mxu0 %v364
        %382 = vmatpush.bf16.msra.mxu0 %v363
        %383 = vmatpush.bf16.msra.mxu0 %v362
        %384 = vmatpush.bf16.msra.mxu0 %v361
        %385 = vmatmul.bf16.gmra.mxu0 %v311
        %v386 = vpop.f32.mrf.mxu0
        %v387 = vadd.f32 %v328, %v386
        %v388 = vpop.f32.mrf.mxu0
        %389 = vdwg.mxu0
        %390 = vadd.xlane.f32.xlu0 %v387
        %v391 = vpop.xlane.xlu0 %390
        %v392 = vmul.f32 %v391, 0.015625
        %v393 = vlaneseq
        %v394 = vand.u32 %v393, 127
        %vm395 = vcmp.lt.s32.totalorder %v394, 64
        %v396 = vsel %vm395, 1, 0
        %v397 = vcvt.s32.f32 %v396
        %v398 = vsub.f32 %v387, %v392
        %v399 = vmul.f32 %v398, %v397
        %v400 = vmul.f32 %v399, %v399
        %401 = vadd.xlane.f32.xlu0 %v400
        %v402 = vpop.xlane.xlu0 %401
        %v403 = vmul.f32 %v402, 0.015625
        %v404 = vadd.f32 %v403, 1e-05
        %v405 = vrsqrt.pop %v404
        %v406 = vmul.f32 %v405, %v404
        %v407 = vmul.f32 %v406, %v405
        %v408 = vmul.f32 0.5, %v407
        %v409 = vsub.f32 1.5, %v408
        %v410 = vmul.f32 %v405, %v409
        %vm411 = vweird.f32 %v404
        %vm412 = vweird.f32 %v405
        %vm413 = vmor %vm411, %vm412
        %v414 = vsel %vm413, %v405, %v410
        %v415 = vmul.f32 %v399, %v414
        %v416 = vperm.slane %v306, 0
        %v417 = vmul.f32 %v415, %v416
        %v418 = vperm.slane %v307, 0
        %v419 = vadd.f32 %v417, %v418
        %v420 = vmax.f32 %v419, 0.0
        %v421 = vpack.c.bf16 %v420, %v420
        %v422 = vld [vmem:[#allocation8] sm:$0xf]
        %v423 = vld [vmem:[#allocation8 + $0x4] sm:$0xf]
        %v424 = vld [vmem:[#allocation8 + $0x8] sm:$0xf]
        %v425 = vld [vmem:[#allocation8 + $0xc] sm:$0xf]
        %v426 = vld [vmem:[#allocation8 + $0x10] sm:$0xf]
        %v427 = vld [vmem:[#allocation8 + $0x14] sm:$0xf]
        %v428 = vld [vmem:[#allocation8 + $0x18] sm:$0xf]
        %v429 = vld [vmem:[#allocation8 + $0x1c] sm:$0xf]
        %v430 = vld [vmem:[#allocation8 + $0x20] sm:$0xf]
        %v431 = vld [vmem:[#allocation8 + $0x24] sm:$0xf]
        %v432 = vld [vmem:[#allocation8 + $0x28] sm:$0xf]
        %v433 = vld [vmem:[#allocation8 + $0x2c] sm:$0xf]
        %v434 = vld [vmem:[#allocation8 + $0x30] sm:$0xf]
        %v435 = vld [vmem:[#allocation8 + $0x34] sm:$0xf]
        %v436 = vld [vmem:[#allocation8 + $0x38] sm:$0xf]
        %v437 = vld [vmem:[#allocation8 + $0x3c] sm:$0xf]
        %v438 = vperm.slane %v308, 0
        %v455 = vunpack.c.l.b16 %v422
        %v456 = vunpack.c.l.b16 %v423
        %v457 = vunpack.c.l.b16 %v424
        %v458 = vunpack.c.l.b16 %v425
        %v459 = vunpack.c.l.b16 %v426
        %v460 = vunpack.c.l.b16 %v427
        %v461 = vunpack.c.l.b16 %v428
        %v462 = vunpack.c.l.b16 %v429
        %v463 = vunpack.c.l.b16 %v430
        %v464 = vunpack.c.l.b16 %v431
        %v465 = vunpack.c.l.b16 %v432
        %v466 = vunpack.c.l.b16 %v433
        %v467 = vunpack.c.l.b16 %v434
        %v468 = vunpack.c.l.b16 %v435
        %v469 = vunpack.c.l.b16 %v436
        %v470 = vunpack.c.l.b16 %v437
        %v471 = vpack.c.b16 %v456, %v455
        %v472 = vpack.c.b16 %v458, %v457
        %v473 = vpack.c.b16 %v460, %v459
        %v474 = vpack.c.b16 %v462, %v461
        %v475 = vpack.c.b16 %v464, %v463
        %v476 = vpack.c.b16 %v466, %v465
        %v477 = vpack.c.b16 %v468, %v467
        %v478 = vpack.c.b16 %v470, %v469
        %487 = vmatpush.bf16.msra.mxu0 %v478
        %488 = vmatpush.bf16.msra.mxu0 %v477
        %489 = vmatpush.bf16.msra.mxu0 %v476
        %490 = vmatpush.bf16.msra.mxu0 %v475
        %491 = vmatpush.bf16.msra.mxu0 %v474
        %492 = vmatpush.bf16.msra.mxu0 %v473
        %493 = vmatpush.bf16.msra.mxu0 %v472
        %494 = vmatpush.bf16.msra.mxu0 %v471
        %495 = vmatmul.bf16.gmra.mxu0 %v421
        %v496 = vpop.f32.mrf.mxu0
        %v497 = vadd.f32 %v438, %v496
        %v498 = vpop.f32.mrf.mxu0
        %499 = vdwg.mxu0
        %500 = vadd.xlane.f32.xlu0 %v497
        %v501 = vpop.xlane.xlu0 %500
        %v502 = vmul.f32 %v501, 0.03125
        %vm503 = vcmp.lt.s32.totalorder %v394, 32
        %v504 = vsel %vm503, 1, 0
        %v505 = vcvt.s32.f32 %v504
        %v506 = vsub.f32 %v497, %v502
        %v507 = vmul.f32 %v506, %v505
        %v508 = vmul.f32 %v507, %v507
        %509 = vadd.xlane.f32.xlu0 %v508
        %v510 = vpop.xlane.xlu0 %509
        %v511 = vmul.f32 %v510, 0.03125
        %v512 = vadd.f32 %v511, 1e-05
        %v513 = vrsqrt.pop %v512
        %v514 = vmul.f32 %v513, %v512
        %v515 = vmul.f32 %v514, %v513
        %v516 = vmul.f32 0.5, %v515
        %v517 = vsub.f32 1.5, %v516
        %v518 = vmul.f32 %v513, %v517
        %vm519 = vweird.f32 %v512
        %vm520 = vweird.f32 %v513
        %vm521 = vmor %vm519, %vm520
        %v522 = vsel %vm521, %v513, %v518
        %v523 = vmul.f32 %v507, %v522
        %v524 = vperm.slane %v309, 0
        %v525 = vmul.f32 %v523, %v524
        %v526 = vperm.slane %v310, 0
        %v527 = vadd.f32 %v525, %v526
        %v528 = vmax.f32 %v527, 0.0
        %529 = vst [vmem:[%s303] sm:$0xff] %v528
        %s530 = sand.u32 %s142, 1
        %s531 = scalar_lea.sflag [#allocation4], %s530
        %s532 = sand.u32 %s142, 1
        %s533 = smul.addr %s532, 8
        %s534 = scalar_lea.vmem [#allocation11], %s533
        // Predicated region
        $region61: #{tpu_custom_call.1} parent=39 // pred_check
          %p535 = pneg %p152
        $region62: #{tpu_custom_call.1} parent=39 // pred_check_branch
          %537 = sbr.rel (%p535) target = $region64
        $region63: #{tpu_custom_call.1} parent=39 // pred_region
          %539 = vsyncadd %s531, 0
          %s540 = smul.addr %s24, 8
          %s541 = scalar_lea.hbm %s5, %s540
          %s543 = sshll.u32 %s534, 4
          %s544 = int_to_ptr.vmem [resolvable:$true] %s543
          %s545 = sshll.u32 %s541, 4
          %s546 = int_to_ptr.hbm [resolvable:$true] %s545
          %548 = dma.vmem_to_hbm [thread:$0]  %s544, 128, %s546, %s531
        $region64: #{tpu_custom_call.1} parent=39 // pred_fallthru
          _
      $region40: #{tpu_custom_call.1} parent=5 // pred_fallthru
        _
      %p549 = scmp.le.s32.totalorder 2, %s19
      // Predicated region
      $region65: #{tpu_custom_call.1} parent=5 // pred_check
        %p550 = pneg %p549
      $region66: #{tpu_custom_call.1} parent=5 // pred_check_branch
        %552 = sbr.rel (%p550) target = $region68
      $region67: #{tpu_custom_call.1} parent=5 // pred_region
        %s553 = ssub.s32 %s19, 2
        // Predicated region
        $region69: #{tpu_custom_call.1} parent=67 // pred_check
          %p554 = pneg %p158
        $region70: #{tpu_custom_call.1} parent=67 // pred_check_branch
          %556 = sbr.rel (%p554) target = $region72
        $region71: #{tpu_custom_call.1} parent=67 // pred_region
          %s557 = sand.u32 %s143, 1
          %s558 = scalar_lea.sflag [#allocation4], %s557
          %s559 = sand.u32 %s143, 1
          %s560 = smul.addr %s559, 8
          %s561 = scalar_lea.vmem [#allocation11], %s560
          %563 = dma.done %s558, 128
        $region72: #{tpu_custom_call.1} parent=67 // pred_fallthru
          _
      $region68: #{tpu_custom_call.1} parent=5 // pred_fallthru
        _
    $region6: #{tpu_custom_call.1} parent=1 // loop_footer
      %s23 = sadd.s32 1, %s19
    $region7: #{tpu_custom_call.1} parent=1 // loop_footer_branch
      %18 = sbr.rel target = $region3
    $region8: #{tpu_custom_call.1} parent=1 // loop_exit
      _
    %564 = vsyncpa [#allocation3], 1
    %s565 = scalar_lea.sflag [#allocation3], 1
    %566 = vsyncpa %s565, 1
    %567 = vsyncpa [#allocation6], 1
    %568 = vsyncpa [#allocation9], 1
    %569 = vsyncpa [#allocation4], 1
    %s570 = scalar_lea.sflag [#allocation4], 1
    %571 = vsyncpa %s570, 1

</llo_original>
